<compile_context>
chip_gen: v6e
topology: v6e:2x2x1
jax: 0.10.0
libtpu: 0.0.40
codegen_flags: <defaults>
</compile_context>

<pallas_src>
import functools

import jax
import jax.numpy as jnp
from jax.experimental import pallas as pl
from jax.experimental.pallas import tpu as pltpu


def to_2tuple(v):
    return (v, v) if isinstance(v, int) else tuple(v)


def _round_up(x, m):
    return ((x + m - 1) // m) * m


# ---------------------------------------------------------------------------
# Pallas kernel: tiled (patches @ weight) + bias (f32 accumulate)
# ---------------------------------------------------------------------------
def _proj_kernel(p_ref, w_ref, b_ref, o_ref):
    # p_ref: [tm, Kp], w_ref: [Kp, tn], b_ref: [1, tn] (f32), o_ref: [tm, tn]
    acc = jnp.dot(p_ref[...], w_ref[...], preferred_element_type=jnp.float32)
    o_ref[...] = (acc + b_ref[...]).astype(o_ref.dtype)


def _proj_matmul(patches, w_mat, b_mat, out_dtype, *, tm_max=512):
    """patches: [M, K], w_mat: [K, E], b_mat: [1, E] (f32). Returns [M, E]."""
    M, K = patches.shape
    E = w_mat.shape[1]
    in_bytes = jnp.dtype(patches.dtype).itemsize
    out_bytes = jnp.dtype(out_dtype).itemsize

    # --- lane-dense padding of K and N (multiples of 128) -------------------
    Kp = _round_up(max(K, 128), 128)
    Np = _round_up(max(E, 128), 128)
    # If the (double-buffered) full weight does not fit a modest VMEM budget,
    # tile N in 256-wide slabs (matches v6e/v7x 256x256 MXU output face).
    if 2 * Kp * Np * in_bytes <= 8 * 1024 * 1024:
        tn = Np
    else:
        tn = 256
        Np = _round_up(E, tn)

    # --- VMEM-budgeted row tile (fits v7x 64 MiB physical VMEM) -------------
    tm = min(tm_max, _round_up(max(M, 8), 8))
    budget = 24 * 1024 * 1024                     # double-buffered in/out tiles
    while tm > 8 and 2 * tm * (Kp * in_bytes + tn * out_bytes) > budget:
        tm = max(8, (tm // 2) // 8 * 8)
    Mp = _round_up(M, tm)

    # --- zero-pad operands (padded rows/cols are sliced away afterwards) ----
    p_pad = jnp.pad(patches, ((0, Mp - M), (0, Kp - K)))
    w_pad = jnp.pad(w_mat, ((0, Kp - K), (0, Np - E)))
    b_pad = jnp.pad(b_mat, ((0, 0), (0, Np - E)))

    grid = (Mp // tm, Np // tn)
    flops = 2 * Mp * Kp * Np
    bytes_accessed = (Mp * Kp * in_bytes + Kp * Np * in_bytes
                      + Mp * Np * out_bytes)
    vmem_need = (2 * tm * Kp * in_bytes + 2 * Kp * tn * in_bytes
                 + 2 * tm * tn * out_bytes + 2 * tn * 4)
    vmem_limit = int(min(64 * 1024 * 1024,
                         max(32 * 1024 * 1024, vmem_need + 8 * 1024 * 1024)))

    out = pl.pallas_call(
        _proj_kernel,
        out_shape=jax.ShapeDtypeStruct((Mp, Np), out_dtype),
        grid_spec=pltpu.PrefetchScalarGridSpec(
            num_scalar_prefetch=0,
            grid=grid,
            in_specs=[
                pl.BlockSpec((tm, Kp), lambda i, j: (i, 0)),   # patch row tile
                pl.BlockSpec((Kp, tn), lambda i, j: (0, j)),   # weight slab
                pl.BlockSpec((1, tn), lambda i, j: (0, j)),    # bias slab (f32)
            ],
            out_specs=pl.BlockSpec((tm, tn), lambda i, j: (i, j)),
        ),
        compiler_params=pltpu.CompilerParams(
            dimension_semantics=("parallel", "parallel"),
            vmem_limit_bytes=vmem_limit),
        cost_estimate=pl.CostEstimate(
            flops=flops, transcendentals=0, bytes_accessed=bytes_accessed),
    )(p_pad, w_pad, b_pad)
    return out[:M, :E]


# ---------------------------------------------------------------------------
# PointRecuder forward
# ---------------------------------------------------------------------------
def point_reducer_forward(x, weight, bias, *, patch_size, stride, padding,
                          compute_dtype=None):
    """x: [B, C, H, W] (NCHW, as in PyTorch).
    weight: [embed_dim, C, kh, kw] (PyTorch OIHW), bias: [embed_dim].
    Returns [B, embed_dim, Ho, Wo].  norm_layer=None -> Identity (no-op).
    compute_dtype: optional narrower dtype (e.g. jnp.bfloat16) for the MXU
    operands; accumulation and bias add stay in f32.
    """
    kh, kw = to_2tuple(patch_size)
    sh, sw = to_2tuple(stride)
    ph, pw = to_2tuple(padding)

    B, C, H, W = x.shape
    E = weight.shape[0]

    x_pad = jnp.pad(x, ((0, 0), (0, 0), (ph, ph), (pw, pw)))
    Hp, Wp = H + 2 * ph, W + 2 * pw
    Ho = (Hp - kh) // sh + 1
    Wo = (Wp - kw) // sw + 1
    K = C * kh * kw

    if (sh, sw) == (kh, kw) and Hp == Ho * kh and Wp == Wo * kw:
        # Non-overlapping patch embedding (standard case): no gather needed --
        # one NHWC transpose + reshape produces the [M, K] patch matrix.
        x_nhwc = jnp.transpose(x_pad, (0, 2, 3, 1))             # [B, Hp, Wp, C]
        p = x_nhwc.reshape(B, Ho, kh, Wo, kw, C)
        p = jnp.transpose(p, (0, 1, 3, 2, 4, 5))                # [B, Ho, Wo, kh, kw, C]
        patches = p.reshape(B * Ho * Wo, K)
        # weight [E, C, kh, kw] -> [kh, kw, C, E] -> [K, E] (matches patch order)
        w_mat = jnp.transpose(weight, (2, 3, 1, 0)).reshape(K, E)
    else:
        # General (overlapping-window) case: gather-based im2col, (C, kh, kw)
        # flatten order matching weight.reshape(E, K).
        row_idx = jnp.arange(Ho)[:, None] * sh + jnp.arange(kh)[None, :]   # [Ho, kh]
        col_idx = jnp.arange(Wo)[:, None] * sw + jnp.arange(kw)[None, :]   # [Wo, kw]
        patches = x_pad[:, :, row_idx[:, None, :, None], col_idx[None, :, None, :]]
        patches = jnp.transpose(patches, (0, 2, 3, 1, 4, 5))    # [B, Ho, Wo, C, kh, kw]
        patches = patches.reshape(B * Ho * Wo, K)
        w_mat = weight.reshape(E, K).T

    out_dtype = x.dtype
    b_mat = bias.reshape(1, E).astype(jnp.float32)
    if compute_dtype is not None:
        patches = patches.astype(compute_dtype)
        w_mat = w_mat.astype(compute_dtype)

    out = _proj_matmul(patches, w_mat, b_mat, out_dtype)        # [B*Ho*Wo, E]
    out = out.reshape(B, Ho, Wo, E)
    # TODO(synk): expose an NHWC output option so a fused consumer can skip
    # this transpose; NCHW kept here to match the PyTorch module exactly.
    out = jnp.transpose(out, (0, 3, 1, 2))                      # [B, E, Ho, Wo]
    return out


# ---------------------------------------------------------------------------
# Demo / self-check
# ---------------------------------------------------------------------------
if __name__ == "__main__":
    # Small shapes consistent with the module.
    B, C, H, W = 2, 4, 16, 16
    patch_size, stride, padding = 4, 4, 0
    embed_dim = 32

    key = jax.random.PRNGKey(0)
    kx, kw_, kb = jax.random.split(key, 3)
    x = jax.random.normal(kx, (B, C, H, W), dtype=jnp.float32)
    weight = 0.1 * jax.random.normal(
        kw_, (embed_dim, C, patch_size, patch_size), dtype=jnp.float32)
    bias = 0.1 * jax.random.normal(kb, (embed_dim,), dtype=jnp.float32)

    # Reference: XLA conv (same semantics as nn.Conv2d).
    ref = jax.lax.conv_general_dilated(
        x, weight, window_strides=(stride, stride),
        padding=[(padding, padding), (padding, padding)],
        dimension_numbers=("NCHW", "OIHW", "NCHW")) + bias[None, :, None, None]

    # f32 path.
    fwd_f32 = jax.jit(functools.partial(
        point_reducer_forward, patch_size=patch_size, stride=stride,
        padding=padding))
    out = jax.block_until_ready(fwd_f32(x, weight, bias))
    assert out.shape == (B, embed_dim, H // stride, W // stride), out.shape
    assert jnp.allclose(out, ref, atol=1e-4, rtol=1e-4), float(
        jnp.max(jnp.abs(out - ref)))

    # bf16 MXU-operand path (f32 accumulation + f32 bias), looser tolerance.
    fwd_bf16 = jax.jit(functools.partial(
        point_reducer_forward, patch_size=patch_size, stride=stride,
        padding=padding, compute_dtype=jnp.bfloat16))
    out_bf16 = jax.block_until_ready(fwd_bf16(x, weight, bias))
    assert out_bf16.shape == out.shape
    assert jnp.allclose(out_bf16, ref, atol=5e-2, rtol=5e-2), float(
        jnp.max(jnp.abs(out_bf16 - ref)))

    print("KERNEL_OK")
</pallas_src>

<mosaic_0001>
module attributes {stable_mosaic.version = 11 : i64} {
  func.func @_proj_kernel(%arg0: i32, %arg1: i32, %arg2: memref<32x128xf32, #tpu.memory_space<vmem>>, %arg3: memref<128x128xf32, #tpu.memory_space<vmem>>, %arg4: memref<1x128xf32, #tpu.memory_space<vmem>>, %arg5: memref<32x128xf32, #tpu.memory_space<vmem>>) attributes {dimension_semantics = [#tpu.dimension_semantics<parallel>, #tpu.dimension_semantics<parallel>], iteration_bounds = array<i64: 1, 1>, scalar_prefetch = 0 : i64, scratch_operands = 0 : i64, tpu.core_type = #tpu.core_type<tc>, window_params = [{transform_indices = @transform_0, window_bounds = array<i64: 32, 128>}, {transform_indices = @transform_1, window_bounds = array<i64: 128, 128>}, {transform_indices = @transform_2, window_bounds = array<i64: 1, 128>}, {transform_indices = @transform_3, window_bounds = array<i64: 32, 128>}]} {
    %c0 = arith.constant 0 : index
    %c0_0 = arith.constant 0 : index
    %0 = vector.load %arg2[%c0, %c0_0] : memref<32x128xf32, #tpu.memory_space<vmem>>, vector<32x128xf32>
    %c0_1 = arith.constant 0 : index
    %c0_2 = arith.constant 0 : index
    %1 = vector.load %arg3[%c0_1, %c0_2] : memref<128x128xf32, #tpu.memory_space<vmem>>, vector<128x128xf32>
    %cst = arith.constant dense<0.000000e+00> : vector<32x128xf32>
    %2 = tpu.matmul %0, %1, %cst {dimension_numbers = #tpu.dot_dimension_numbers<[1], [0], [0], [1], [0, 0, 1, 1], [], []>} : vector<32x128xf32>, vector<128x128xf32>, vector<32x128xf32> -> vector<32x128xf32>
    %c0_3 = arith.constant 0 : index
    %c0_4 = arith.constant 0 : index
    %3 = vector.load %arg4[%c0_3, %c0_4] : memref<1x128xf32, #tpu.memory_space<vmem>>, vector<1x128xf32>
    %4 = vector.broadcast %3 : vector<1x128xf32> to vector<32x128xf32>
    %5 = arith.addf %2, %4 : vector<32x128xf32>
    %c0_5 = arith.constant 0 : index
    %c0_6 = arith.constant 0 : index
    %6 = vector.load %arg5[%c0_5, %c0_6] : memref<32x128xf32, #tpu.memory_space<vmem>>, vector<32x128xf32>
    tpu.vector_store %arg5[%c0_5, %c0_6], %5 {strides = array<i32>} : memref<32x128xf32, #tpu.memory_space<vmem>>, vector<32x128xf32>,
    return
  }
  func.func @transform_0(%arg0: i32, %arg1: i32) -> (i32, i32) {
    %c0_i32 = arith.constant 0 : i32
    %c0_i32_0 = arith.constant 0 : i32
    return %arg0, %c0_i32 : i32, i32
  }
  func.func @transform_1(%arg0: i32, %arg1: i32) -> (i32, i32) {
    %c0_i32 = arith.constant 0 : i32
    %c0_i32_0 = arith.constant 0 : i32
    return %c0_i32, %arg1 : i32, i32
  }
  func.func @transform_2(%arg0: i32, %arg1: i32) -> (i32, i32) {
    %c0_i32 = arith.constant 0 : i32
    %c0_i32_0 = arith.constant 0 : i32
    return %c0_i32, %arg1 : i32, i32
  }
  func.func @transform_3(%arg0: i32, %arg1: i32) -> (i32, i32) {
    %c0_i32 = arith.constant 0 : i32
    return %arg0, %arg1 : i32, i32
  }
}

</mosaic_0001>

<llo_original>
// kernel: point_reducer_forward.1
$region0: #{point_reducer_forward.1}
  #allocation0 [shape = 'u32[]', space=smem, size = 0x4, offset = 0x4, fixed_abs, tag = 'smem constant byte address 0x4 - core index']
  #allocation1 [shape = 'u32[144,128]{1,0:T(1,128)}', space=vmem, size = 0x12000, scoped, tag = 'internal scratch']
  %s0 = inlined_call_operand.vmem [shape: f32[32,128], index: 0, kind: input, shape index: {}]
  %s1 = inlined_call_operand.vmem [shape: f32[128,128], index: 1, kind: input, shape index: {}]
  %s2 = inlined_call_operand.vmem [shape: f32[1,128], index: 2, kind: input, shape index: {}]
  %s3 = inlined_call_operand.hbm [shape: f32[32,128], index: 3, kind: output, shape index: {}]
  %s4 = sld [smem:[#allocation0]]
  $region22: #{point_reducer_forward.1} parent=0
    _
  %s6 = ssub.s32 1, %s4
  %s7 = scalar_select 0, %s6, %s4
  $region1: #{point_reducer_forward.1} parent=0
    #allocation2 [shape = 'u8[16384]{0}', space=vmem, size = 0x4000, scoped, tag = 'output window, operand 0, single buffered']
    #allocation3 [shape = 's32[1]{0}', space=sflag, size = 0x4, scoped, tag = 'scoped memory for point_reducer_forward.1']
    %8 = vsyncpa [#allocation3], 0
    // Predicated region
    $region2: #{point_reducer_forward.1} parent=1 // pred_check
      _
    $region3: #{point_reducer_forward.1} parent=1 // pred_check_branch
      %10 = sbr.rel (0) target = $region5
    $region4: #{point_reducer_forward.1} parent=1 // pred_region
      _
    $region5: #{point_reducer_forward.1} parent=1 // pred_fallthru
      _
    // Predicated region
    $region6: #{point_reducer_forward.1} parent=1 // pred_check
      _
    $region7: #{point_reducer_forward.1} parent=1 // pred_check_branch
      %12 = sbr.rel (0) target = $region9
    $region8: #{point_reducer_forward.1} parent=1 // pred_region
      _
    $region9: #{point_reducer_forward.1} parent=1 // pred_fallthru
      _
    // Predicated region
    $region10: #{point_reducer_forward.1} parent=1 // pred_check
      _
    $region11: #{point_reducer_forward.1} parent=1 // pred_check_branch
      %14 = sbr.rel (0) target = $region13
    $region12: #{point_reducer_forward.1} parent=1 // pred_region
      _
    $region13: #{point_reducer_forward.1} parent=1 // pred_fallthru
      _
    %v15 = vld [vmem:[%s0] sm:$0xff]
    %v16 = vld [vmem:[%s0 + $0x8] sm:$0xff]
    %v17 = vld [vmem:[%s0 + $0x10] sm:$0xff]
    %v18 = vld [vmem:[%s0 + $0x18] sm:$0xff]
    %v19 = vld [vmem:[%s1] sm:$0xff]
    %v20 = vld [vmem:[%s1 + $0x8] sm:$0xff]
    %v21 = vld [vmem:[%s1 + $0x10] sm:$0xff]
    %v22 = vld [vmem:[%s1 + $0x18] sm:$0xff]
    %v23 = vld [vmem:[%s1 + $0x20] sm:$0xff]
    %v24 = vld [vmem:[%s1 + $0x28] sm:$0xff]
    %v25 = vld [vmem:[%s1 + $0x30] sm:$0xff]
    %v26 = vld [vmem:[%s1 + $0x38] sm:$0xff]
    %v27 = vld [vmem:[%s1 + $0x40] sm:$0xff]
    %v28 = vld [vmem:[%s1 + $0x48] sm:$0xff]
    %v29 = vld [vmem:[%s1 + $0x50] sm:$0xff]
    %v30 = vld [vmem:[%s1 + $0x58] sm:$0xff]
    %v31 = vld [vmem:[%s1 + $0x60] sm:$0xff]
    %v32 = vld [vmem:[%s1 + $0x68] sm:$0xff]
    %v33 = vld [vmem:[%s1 + $0x70] sm:$0xff]
    %v34 = vld [vmem:[%s1 + $0x78] sm:$0xff]
    %v35 = vld [vmem:[%s2] sm:$0x1]
    %v37 = vlaneseq
    %v38 = vshrl.u32 %v37, 7
    %v39 = vsub.s32 0, %v38
    %v40 = vrot.slane %v35, %v39
    %42 = vmatprep.subr.mxu0 0.0
    %43 = vmatpush1.msra.mxu0 %v34
    %44 = vmatprep.subr.mxu0 0.0
    %45 = vmatpush1.msra.mxu0 %v33
    %46 = vmatprep.subr.mxu0 0.0
    %47 = vmatpush1.msra.mxu0 %v32
    %48 = vmatprep.subr.mxu0 0.0
    %49 = vmatpush1.msra.mxu0 %v31
    %50 = vmatprep.subr.mxu0 0.0
    %51 = vmatpush1.msra.mxu0 %v30
    %52 = vmatprep.subr.mxu0 0.0
    %53 = vmatpush1.msra.mxu0 %v29
    %54 = vmatprep.subr.mxu0 0.0
    %55 = vmatpush1.msra.mxu0 %v28
    %56 = vmatprep.subr.mxu0 0.0
    %57 = vmatpush1.msra.mxu0 %v27
    %58 = vmatprep.subr.mxu0 0.0
    %59 = vmatpush1.msra.mxu0 %v26
    %60 = vmatprep.subr.mxu0 0.0
    %61 = vmatpush1.msra.mxu0 %v25
    %62 = vmatprep.subr.mxu0 0.0
    %63 = vmatpush1.msra.mxu0 %v24
    %64 = vmatprep.subr.mxu0 0.0
    %65 = vmatpush1.msra.mxu0 %v23
    %66 = vmatprep.subr.mxu0 0.0
    %67 = vmatpush1.msra.mxu0 %v22
    %68 = vmatprep.subr.mxu0 0.0
    %69 = vmatpush1.msra.mxu0 %v21
    %70 = vmatprep.subr.mxu0 0.0
    %71 = vmatpush1.msra.mxu0 %v20
    %72 = vmatprep.subr.mxu0 0.0
    %73 = vmatpush1.msra.mxu0 %v19
    %74 = vmatprep.subr.mxu0 0.0
    %75 = vmatpush2.msra.mxu0 0.0
    %76 = vmatprep.subr.mxu0 0.0
    %77 = vmatpush2.msra.mxu0 0.0
    %78 = vmatprep.subr.mxu0 0.0
    %79 = vmatpush2.msra.mxu0 0.0
    %80 = vmatprep.subr.mxu0 0.0
    %81 = vmatpush2.msra.mxu0 0.0
    %82 = vmatprep.subr.mxu0 0.0
    %83 = vmatpush2.msra.mxu0 0.0
    %84 = vmatprep.subr.mxu0 0.0
    %85 = vmatpush2.msra.mxu0 0.0
    %86 = vmatprep.subr.mxu0 0.0
    %87 = vmatpush2.msra.mxu0 0.0
    %88 = vmatprep.subr.mxu0 0.0
    %89 = vmatpush2.msra.mxu0 0.0
    %90 = vmatprep.subr.mxu0 0.0
    %91 = vmatpush2.msra.mxu0 0.0
    %92 = vmatprep.subr.mxu0 0.0
    %93 = vmatpush2.msra.mxu0 0.0
    %94 = vmatprep.subr.mxu0 0.0
    %95 = vmatpush2.msra.mxu0 0.0
    %96 = vmatprep.subr.mxu0 0.0
    %97 = vmatpush2.msra.mxu0 0.0
    %98 = vmatprep.subr.mxu0 0.0
    %99 = vmatpush2.msra.mxu0 0.0
    %100 = vmatprep.subr.mxu0 0.0
    %101 = vmatpush2.msra.mxu0 0.0
    %102 = vmatprep.subr.mxu0 0.0
    %103 = vmatpush2.msra.mxu0 0.0
    %104 = vmatprep.subr.mxu0 0.0
    %105 = vmatpush2.msra.mxu0 0.0
    %106 = vmatprep.mubr.f32.mxu0 0.0
    %107 = vmatmul.mubr.f32.gmra.mxu0 %v15
    %v108 = vpop.f32.mrf.mxu0
    %v109 = vadd.f32 %v40, %v108
    %v110 = vpop.f32.mrf.mxu0
    %111 = vmatprep.mubr.f32.mxu0 0.0
    %112 = vmatmul.mubr.f32.gmra.mxu0 %v16
    %v113 = vpop.f32.mrf.mxu0
    %v114 = vadd.f32 %v40, %v113
    %v115 = vpop.f32.mrf.mxu0
    %116 = vmatprep.mubr.f32.mxu0 0.0
    %117 = vmatmul.mubr.f32.gmra.mxu0 %v17
    %v118 = vpop.f32.mrf.mxu0
    %v119 = vadd.f32 %v40, %v118
    %v120 = vpop.f32.mrf.mxu0
    %121 = vmatprep.mubr.f32.mxu0 0.0
    %122 = vmatmul.mubr.f32.gmra.mxu0 %v18
    %v123 = vpop.f32.mrf.mxu0
    %v124 = vadd.f32 %v40, %v123
    %v125 = vpop.f32.mrf.mxu0
    %126 = vdwg.mxu0
    %127 = vst [vmem:[#allocation2] sm:$0xff] %v109
    %128 = vst [vmem:[#allocation2 + $0x8] sm:$0xff] %v114
    %129 = vst [vmem:[#allocation2 + $0x10] sm:$0xff] %v119
    %130 = vst [vmem:[#allocation2 + $0x18] sm:$0xff] %v124
    // Predicated region
    $region14: #{point_reducer_forward.1} parent=1 // pred_check
      _
    $region15: #{point_reducer_forward.1} parent=1 // pred_check_branch
      %132 = sbr.rel (0) target = $region17
    $region16: #{point_reducer_forward.1} parent=1 // pred_region
      %s134 = ssub.s32 512, 512
      %135 = vsyncadd [#allocation3], %s134
      %s136 = sshll.u32 [#allocation2], 4
      %s137 = int_to_ptr.vmem [resolvable:$true] %s136
      %142 = dma.vmem_to_hbm [thread:$0]  %s137, 512, %s3, [#allocation3], 128, 128, 8
    $region17: #{point_reducer_forward.1} parent=1 // pred_fallthru
      _
    // Predicated region
    $region18: #{point_reducer_forward.1} parent=1 // pred_check
      _
    $region19: #{point_reducer_forward.1} parent=1 // pred_check_branch
      %144 = sbr.rel (0) target = $region21
    $region20: #{point_reducer_forward.1} parent=1 // pred_region
      %145 = dma.done [#allocation3], 512
    $region21: #{point_reducer_forward.1} parent=1 // pred_fallthru
      _
    %146 = vsyncpa [#allocation3], 1

</llo_original>
